<compile_context>
chip_gen: v5e
topology: v5e:2x2
jax: 0.10.0
libtpu: 0.0.40
codegen_flags: <defaults>
</compile_context>

<pallas_src>
import functools

import jax
import jax.numpy as jnp
from jax.experimental import pallas as pl
from jax.experimental.pallas import tpu as pltpu


# --------------------------- hardware-aware budgets --------------------------

def _vmem_capacity_bytes():
    """Physical VMEM per TensorCore; conservative fallback if the query fails."""
    try:
        return int(pltpu.get_tpu_info().vmem_capacity_bytes)
    except Exception:
        return 64 << 20  # v7x-sized fallback (smallest of v5e/v6e/v7x)


# ------------------------------ fused kernel ---------------------------------

def _se_fused_kernel(x_ref, w1_ref, w2_ref, o_ref, *, inv_hw):
    """Whole-slab SE for one batch element: pool + FC1/ReLU/FC2/sigmoid + scale.

    x_ref:  (1, C, HW) resident activation slab
    w1_ref: (Cr, C)    first FC weight (PyTorch layout, no bias), f32
    w2_ref: (C, Cr)    second FC weight (PyTorch layout, no bias), f32
    o_ref:  (1, C, HW) output slab
    """
    x = x_ref[0]                                                     # (C, HW)
    # Global average pool as x @ ones on the MXU: f32 accumulation, and it
    # keeps the VPU/XLU slots free (the kernel is HBM-bound anyway).
    ones = jnp.ones((x.shape[-1], 1), x.dtype)
    pooled = jnp.dot(x, ones, preferred_element_type=jnp.float32) * inv_hw   # (C, 1)
    h = jnp.dot(w1_ref[...], pooled, preferred_element_type=jnp.float32)     # (Cr, 1)
    h = jnp.maximum(h, 0.0)                                                  # ReLU
    logits = jnp.dot(w2_ref[...], h, preferred_element_type=jnp.float32)     # (C, 1)
    gate = jax.nn.sigmoid(logits).astype(x.dtype)                            # (C, 1)
    # (C, 1) gate broadcasts across lanes for free; multiply in x.dtype so
    # bf16 inputs stay packed on the VPU.
    o_ref[0] = (x * gate).astype(o_ref.dtype)


# --------------------------- two-pass fallback kernels ------------------------

def _se_gate_kernel(x_ref, w1_ref, w2_ref, y_ref, acc_ref, *, inv_hw, n_t):
    """Fallback kernel 1: tiled global-average-pool + FC1/ReLU/FC2/sigmoid.

    NOTE: the reduction axis t = pl.program_id(1) must remain the innermost
    grid axis (marked "arbitrary"); acc_ref is per-core VMEM scratch that
    persists across the t steps of one batch element.  Do not reorder the grid.

    x_ref:  (1, C, thw) activation tile for batch element b
    w1_ref: (Cr, C)     first FC weight
    w2_ref: (C, Cr)     second FC weight
    y_ref:  (1, C, 1)   per-(batch, channel) gate output
    acc_ref:(C, 1)      VMEM partial-sum accumulator (f32)
    """
    t = pl.program_id(1)

    @pl.when(t == 0)
    def _():
        acc_ref[...] = jnp.zeros_like(acc_ref)

    xblk = x_ref[0]                                                  # (C, thw)
    # Partial sums on the MXU (idle otherwise) instead of a wide XLU lane reduce.
    ones = jnp.ones((xblk.shape[-1], 1), xblk.dtype)
    acc_ref[...] += jnp.dot(xblk, ones, preferred_element_type=jnp.float32)  # (C, 1)

    @pl.when(t == n_t - 1)
    def _():
        pooled = acc_ref[...] * inv_hw                               # AdaptiveAvgPool2d(1)
        h = jnp.maximum(
            jnp.dot(w1_ref[...], pooled, preferred_element_type=jnp.float32), 0.0)
        logits = jnp.dot(w2_ref[...], h, preferred_element_type=jnp.float32)
        y_ref[0] = jax.nn.sigmoid(logits).astype(y_ref.dtype)


def _se_scale_kernel(x_ref, y_ref, o_ref):
    """Fallback kernel 2: out = x * gate, gate broadcast across the lane axis."""
    o_ref[0] = (x_ref[0] * y_ref[0]).astype(o_ref.dtype)            # (C, thw) * (C, 1)


# ------------------------------- wrapper ------------------------------------

def _pick_hw_tile(hw, c, itemsize, target_bytes):
    """Largest lane-dense (multiple of 128) tile of the H*W axis that divides
    hw and keeps one x tile <= target_bytes; otherwise fall back to the full
    axis (block == full dim is always legal)."""
    for t in (8192, 4096, 2048, 1024, 512, 256, 128):
        if hw % t == 0 and c * t * itemsize <= target_bytes:
            return t
    # If HW % 128 != 0 this produces masked vst.msk stores in the scale kernel;
    # acceptable for rare awkward shapes (correct, just slower on the store side).
    return 128 if hw % 128 == 0 else hw


def se_layer(x, w1, w2, *, donate_x=False, force_two_pass=False):
    """SELayer forward.

    x:  (B, C, H, W)
    w1: (Cr, C)   -- nn.Linear(channel, channel // reduction, bias=False).weight
    w2: (C, Cr)   -- nn.Linear(channel // reduction, channel, bias=False).weight
    donate_x: if True, the output aliases x's HBM buffer (only safe when the
              caller no longer needs x).
    force_two_pass: force the tiled 2-kernel fallback (testing / huge slabs).
    returns (B, C, H, W), same dtype as x.
    """
    B, C, H, W = x.shape
    Cr = w1.shape[0]
    HW = H * W
    x3 = x.reshape(B, C, HW)                                  # view, no data movement
    itemsize = jnp.dtype(x.dtype).itemsize

    w1f = w1.astype(jnp.float32)
    w2f = w2.astype(jnp.float32)

    vmem_cap = _vmem_capacity_bytes()
    io_alias = {0: 0} if donate_x else {}

    # ---------------- fused single-kernel path ------------------------------
    slab_bytes = C * HW * itemsize
    weight_bytes = 4 * (w1.size + w2.size)
    # in + out slabs are each double-buffered by the pipeline, plus weights
    # and a small margin for compiler scratch.
    fused_need = 4 * slab_bytes + 2 * weight_bytes + (2 << 20)
    fused_budget = min(int(0.7 * vmem_cap), 96 << 20)

    if (not force_two_pass) and fused_need <= fused_budget:
        vmem_limit = int(max(min(int(0.8 * vmem_cap), fused_need + (4 << 20)),
                             16 << 20))
        out = pl.pallas_call(
            functools.partial(_se_fused_kernel, inv_hw=1.0 / HW),
            out_shape=jax.ShapeDtypeStruct((B, C, HW), x.dtype),
            grid=(B,),
            in_specs=[
                pl.BlockSpec((1, C, HW), lambda b: (b, 0, 0)),
                pl.BlockSpec((Cr, C), lambda b: (0, 0)),
                pl.BlockSpec((C, Cr), lambda b: (0, 0)),
            ],
            out_specs=pl.BlockSpec((1, C, HW), lambda b: (b, 0, 0)),
            compiler_params=pltpu.CompilerParams(
                dimension_semantics=("parallel",),
                vmem_limit_bytes=vmem_limit),
            input_output_aliases=io_alias,
        )(x3, w1f, w2f)
        return out.reshape(B, C, H, W)

    # ---------------- two-pass fallback (very large C*HW) -------------------
    tile_budget = min(8 << 20, vmem_cap // 10)   # ~6.4 MiB on v7x, 8 MiB on v5e/v6e
    thw = _pick_hw_tile(HW, C, itemsize, tile_budget)
    n_t = HW // thw
    tile_bytes = C * thw * itemsize
    vmem_limit = int(max(min(int(0.8 * vmem_cap), 4 * tile_bytes + (8 << 20)),
                         16 << 20))

    # Kernel 1: tiled global-avg-pool + FC1 + ReLU + FC2 + sigmoid -> gate (B, C, 1).
    # (On v7x with batch==1 one TensorCore idles here; a core-parallel split of
    #  the t axis would recover it, omitted for simplicity.)
    gate = pl.pallas_call(
        functools.partial(_se_gate_kernel, inv_hw=1.0 / HW, n_t=n_t),
        out_shape=jax.ShapeDtypeStruct((B, C, 1), x.dtype),
        grid_spec=pltpu.PrefetchScalarGridSpec(
            num_scalar_prefetch=0,
            grid=(B, n_t),          # reduction axis t innermost (required by acc_ref)
            in_specs=[
                pl.BlockSpec((1, C, thw), lambda b, t: (b, 0, t)),
                pl.BlockSpec((Cr, C), lambda b, t: (0, 0)),
                pl.BlockSpec((C, Cr), lambda b, t: (0, 0)),
            ],
            out_specs=pl.BlockSpec((1, C, 1), lambda b, t: (b, 0, 0)),
            scratch_shapes=[pltpu.VMEM((C, 1), jnp.float32)],
        ),
        compiler_params=pltpu.CompilerParams(
            dimension_semantics=("parallel", "arbitrary"),
            vmem_limit_bytes=vmem_limit),
    )(x3, w1f, w2f)

    # Kernel 2: x * gate, tiled over (batch, HW) for real double-buffering.
    out = pl.pallas_call(
        _se_scale_kernel,
        out_shape=jax.ShapeDtypeStruct((B, C, HW), x.dtype),
        grid=(B, n_t),
        in_specs=[
            pl.BlockSpec((1, C, thw), lambda b, t: (b, 0, t)),
            pl.BlockSpec((1, C, 1), lambda b, t: (b, 0, 0)),
        ],
        out_specs=pl.BlockSpec((1, C, thw), lambda b, t: (b, 0, t)),
        compiler_params=pltpu.CompilerParams(
            dimension_semantics=("parallel", "parallel"),
            vmem_limit_bytes=vmem_limit),
        input_output_aliases=io_alias,
    )(x3, gate)

    return out.reshape(B, C, H, W)


# --------------------------------- main -------------------------------------

if __name__ == "__main__":
    key = jax.random.PRNGKey(0)
    kx, k1, k2 = jax.random.split(key, 3)

    # Shapes consistent with the module: SELayer(channel=64) ->
    # reduction = max(8, 64 // 16) = 8, hidden = 64 // 8 = 8.
    B, C, H, W = 2, 64, 16, 16
    reduction = max(8, C // 16)
    Cr = C // reduction

    x = jax.random.normal(kx, (B, C, H, W), jnp.float32)
    w1 = jax.random.normal(k1, (Cr, C), jnp.float32) * (1.0 / jnp.sqrt(C))
    w2 = jax.random.normal(k2, (C, Cr), jnp.float32) * (1.0 / jnp.sqrt(Cr))

    # Pure-JAX reference of SELayer.forward for correctness.
    y_ref = jnp.mean(x, axis=(2, 3))                      # AdaptiveAvgPool2d(1).view(b, c)
    y_ref = jnp.maximum(y_ref @ w1.T, 0.0)                # Linear + ReLU
    y_ref = jax.nn.sigmoid(y_ref @ w2.T)                  # Linear + Sigmoid
    ref = x * y_ref[:, :, None, None]

    run = jax.jit(se_layer, static_argnames=("donate_x", "force_two_pass"))

    # Default (fused single-kernel) path.
    out = jax.block_until_ready(run(x, w1, w2))
    assert out.shape == x.shape and out.dtype == x.dtype
    assert bool(jnp.all(jnp.isfinite(out)))
    assert bool(jnp.allclose(out, ref, rtol=1e-4, atol=1e-4))

    # Two-pass fallback path (exercised explicitly for coverage).
    out2 = jax.block_until_ready(run(x, w1, w2, force_two_pass=True))
    assert out2.shape == x.shape and out2.dtype == x.dtype
    assert bool(jnp.allclose(out2, ref, rtol=1e-4, atol=1e-4))

    print("KERNEL_OK")
</pallas_src>

<mosaic_0001>
module attributes {stable_mosaic.version = 11 : i64} {
  func.func @_se_fused_kernel(%arg0: i32, %arg1: memref<1x64x256xf32, #tpu.memory_space<vmem>>, %arg2: memref<8x64xf32, #tpu.memory_space<vmem>>, %arg3: memref<64x8xf32, #tpu.memory_space<vmem>>, %arg4: memref<1x64x256xf32, #tpu.memory_space<vmem>>) attributes {dimension_semantics = [#tpu.dimension_semantics<parallel>], iteration_bounds = array<i64: 2>, scalar_prefetch = 0 : i64, scratch_operands = 0 : i64, tpu.core_type = #tpu.core_type<tc>, window_params = [{transform_indices = @transform_0, window_bounds = array<i64: 1, 64, 256>}, {pipeline_mode = #tpu.pipeline_mode<synchronous>, transform_indices = @transform_1, window_bounds = array<i64: 8, 64>}, {pipeline_mode = #tpu.pipeline_mode<synchronous>, transform_indices = @transform_2, window_bounds = array<i64: 64, 8>}, {transform_indices = @transform_3, window_bounds = array<i64: 1, 64, 256>}]} {
    %c0 = arith.constant 0 : index
    %c0_0 = arith.constant 0 : index
    %c0_1 = arith.constant 0 : index
    %0 = vector.load %arg1[%c0, %c0_0, %c0_1] : memref<1x64x256xf32, #tpu.memory_space<vmem>>, vector<1x64x256xf32>
    %1 = vector.shape_cast %0 : vector<1x64x256xf32> to vector<64x256xf32>
    %cst = arith.constant 1.000000e+00 : f32
    %2 = vector.broadcast %cst : f32 to vector<256x1xf32>
    %cst_2 = arith.constant dense<0.000000e+00> : vector<64x1xf32>
    %3 = tpu.matmul %1, %2, %cst_2 {dimension_numbers = #tpu.dot_dimension_numbers<[1], [0], [0], [1], [0, 0, 1, 1], [], []>} : vector<64x256xf32>, vector<256x1xf32>, vector<64x1xf32> -> vector<64x1xf32>
    %cst_3 = arith.constant 3.906250e-03 : f32
    %4 = vector.broadcast %cst_3 : f32 to vector<64x1xf32>
    %5 = arith.mulf %3, %4 : vector<64x1xf32>
    %c0_4 = arith.constant 0 : index
    %c0_5 = arith.constant 0 : index
    %6 = vector.load %arg2[%c0_4, %c0_5] : memref<8x64xf32, #tpu.memory_space<vmem>>, vector<8x64xf32>
    %cst_6 = arith.constant dense<0.000000e+00> : vector<8x1xf32>
    %7 = tpu.matmul %6, %5, %cst_6 {dimension_numbers = #tpu.dot_dimension_numbers<[1], [0], [0], [1], [0, 0, 1, 1], [], []>} : vector<8x64xf32>, vector<64x1xf32>, vector<8x1xf32> -> vector<8x1xf32>
    %cst_7 = arith.constant 0.000000e+00 : f32
    %8 = vector.broadcast %cst_7 : f32 to vector<8x1xf32>
    %9 = arith.maximumf %7, %8 : vector<8x1xf32>
    %c0_8 = arith.constant 0 : index
    %c0_9 = arith.constant 0 : index
    %10 = vector.load %arg3[%c0_8, %c0_9] : memref<64x8xf32, #tpu.memory_space<vmem>>, vector<64x8xf32>
    %cst_10 = arith.constant dense<0.000000e+00> : vector<64x1xf32>
    %11 = tpu.matmul %10, %9, %cst_10 {dimension_numbers = #tpu.dot_dimension_numbers<[1], [0], [0], [1], [0, 0, 1, 1], [], []>} : vector<64x8xf32>, vector<8x1xf32>, vector<64x1xf32> -> vector<64x1xf32>
    %12 = arith.negf %11 : vector<64x1xf32>
    %13 = math.exp %12 : vector<64x1xf32>
    %cst_11 = arith.constant 1.000000e+00 : f32
    %14 = vector.broadcast %cst_11 : f32 to vector<64x1xf32>
    %15 = arith.addf %14, %13 : vector<64x1xf32>
    %16 = arith.divf %14, %15 : vector<64x1xf32>
    %17 = vector.broadcast %16 : vector<64x1xf32> to vector<64x256xf32>
    %18 = arith.mulf %1, %17 : vector<64x256xf32>
    %c0_12 = arith.constant 0 : index
    %c0_13 = arith.constant 0 : index
    %c0_14 = arith.constant 0 : index
    %19 = vector.load %arg4[%c0_12, %c0_13, %c0_14] : memref<1x64x256xf32, #tpu.memory_space<vmem>>, vector<1x64x256xf32>
    %20 = vector.shape_cast %19 : vector<1x64x256xf32> to vector<64x256xf32>
    %21 = vector.shape_cast %18 : vector<64x256xf32> to vector<1x64x256xf32>
    tpu.vector_store %arg4[%c0_12, %c0_13, %c0_14], %21 {strides = array<i32>} : memref<1x64x256xf32, #tpu.memory_space<vmem>>, vector<1x64x256xf32>,
    return
  }
  func.func @transform_0(%arg0: i32) -> (i32, i32, i32) {
    %c0_i32 = arith.constant 0 : i32
    %c0_i32_0 = arith.constant 0 : i32
    %c0_i32_1 = arith.constant 0 : i32
    return %arg0, %c0_i32, %c0_i32_0 : i32, i32, i32
  }
  func.func @transform_1(%arg0: i32) -> (i32, i32) {
    %c0_i32 = arith.constant 0 : i32
    %c0_i32_0 = arith.constant 0 : i32
    %c0_i32_1 = arith.constant 0 : i32
    return %c0_i32, %c0_i32_0 : i32, i32
  }
  func.func @transform_2(%arg0: i32) -> (i32, i32) {
    %c0_i32 = arith.constant 0 : i32
    %c0_i32_0 = arith.constant 0 : i32
    %c0_i32_1 = arith.constant 0 : i32
    return %c0_i32, %c0_i32_0 : i32, i32
  }
  func.func @transform_3(%arg0: i32) -> (i32, i32, i32) {
    %c0_i32 = arith.constant 0 : i32
    %c0_i32_0 = arith.constant 0 : i32
    %c0_i32_1 = arith.constant 0 : i32
    return %arg0, %c0_i32, %c0_i32_0 : i32, i32, i32
  }
}

</mosaic_0001>

<llo_original>
// kernel: se_layer.1
$region0: #{se_layer.1}
  #allocation0 [shape = 'u32[]', space=smem, size = 0x4, offset = 0x4, fixed_abs, tag = 'smem constant byte address 0x4 - core index']
  #allocation1 [shape = 'u32[72,128]{1,0:T(1,128)}', space=vmem, size = 0x9000, scoped, tag = 'internal scratch']
  %s0 = inlined_call_operand.vmem [shape: f32[2,64,256], index: 0, kind: input, shape index: {}]
  %s1 = inlined_call_operand.vmem [shape: f32[8,64], index: 1, kind: input, shape index: {}]
  %s2 = inlined_call_operand.vmem [shape: f32[64,8], index: 2, kind: input, shape index: {}]
  %s3 = inlined_call_operand.vmem [shape: f32[2,64,256], index: 3, kind: output, shape index: {}]
  %s4 = sld [smem:[#allocation0]]
  $region45: #{se_layer.1} parent=0
    _
  %s6 = ssub.s32 1, %s4
  %s7 = scalar_select 0, %s6, %s4
  loop: start=0, step=1, limit=4
  $region2: #{se_layer.1} parent=0 // loop_pre_header
    _
  $region3: #{se_layer.1} parent=0 // loop_header
    %s9 = sphi 0, %s13
    %p10 = scmp.ge.s32.totalorder %s9, 4
    %s19 = sphi 0, %s21
    %s22 = sphi 0, %s19
    %s23 = sphi 0, %s22
    %s39 = sphi 0, %s23
    %s43 = sphi 0, %s43
    %s45 = sphi 0, %s43
    %s46 = sphi 0, %s45
    %s60 = sphi 0, %s46
    %s64 = sphi 0, %s64
    %s66 = sphi 0, %s64
    %s67 = sphi 0, %s66
    %s81 = sphi 0, %s67
    %s87 = sphi 0, %s89
    %s90 = sphi 0, %s87
    %s91 = sphi 0, %s90
    %s107 = sphi 0, %s91
  $region4: #{se_layer.1} parent=0 // loop_header_branch
    %12 = sbr.rel (%p10) target = $region8
  $region5: #{se_layer.1} parent=0 // loop_body
    %s14 = ssub.s32 %s9, 1
    %s15 = ssub.s32 %s9, 2
    %s16 = sadd.s32 %s9, 1
    %s17 = ssub.s32 %s9, %s16
    %p18 = scmp.eq.s32.totalorder %s17, 0
    %s20 = sadd.s32 %s19, 1
    %s21 = scalar_select %p18, %s19, %s20
    %p24 = pneg %p18
    %p25 = scmp.eq.s32.totalorder %s9, 1
    %p26 = por %p24, %p25
    %p27 = scmp.ne.s32.totalorder %s19, %s22
    %p28 = scmp.eq.s32.totalorder %s9, 0
    %p29 = por %p27, %p28
    %p30 = scmp.ne.s32.totalorder %s19, %s22
    %p31 = scmp.eq.s32.totalorder %s14, 1
    %p32 = por %p30, %p31
    %p33 = scmp.ne.s32.totalorder %s22, %s23
    %p34 = scmp.eq.s32.totalorder %s14, 0
    %p35 = por %p33, %p34
    %p36 = scmp.ne.s32.totalorder %s22, %s23
    %p37 = scmp.eq.s32.totalorder %s15, 1
    %p38 = por %p36, %p37
    %p40 = scmp.ne.s32.totalorder %s23, %s39
    %p41 = scmp.eq.s32.totalorder %s15, 0
    %p42 = por %p40, %p41
    %s44 = sadd.s32 %s43, 1
    %p47 = scmp.eq.s32.totalorder %s9, 1
    %p48 = scmp.ne.s32.totalorder %s43, %s45
    %p49 = scmp.eq.s32.totalorder %s9, 0
    %p50 = por %p48, %p49
    %p51 = scmp.ne.s32.totalorder %s43, %s45
    %p52 = scmp.eq.s32.totalorder %s14, 1
    %p53 = por %p51, %p52
    %p54 = scmp.ne.s32.totalorder %s45, %s46
    %p55 = scmp.eq.s32.totalorder %s14, 0
    %p56 = por %p54, %p55
    %p57 = scmp.ne.s32.totalorder %s45, %s46
    %p58 = scmp.eq.s32.totalorder %s15, 1
    %p59 = por %p57, %p58
    %p61 = scmp.ne.s32.totalorder %s46, %s60
    %p62 = scmp.eq.s32.totalorder %s15, 0
    %p63 = por %p61, %p62
    %s65 = sadd.s32 %s64, 1
    %p68 = scmp.eq.s32.totalorder %s9, 1
    %p69 = scmp.ne.s32.totalorder %s64, %s66
    %p70 = scmp.eq.s32.totalorder %s9, 0
    %p71 = por %p69, %p70
    %p72 = scmp.ne.s32.totalorder %s64, %s66
    %p73 = scmp.eq.s32.totalorder %s14, 1
    %p74 = por %p72, %p73
    %p75 = scmp.ne.s32.totalorder %s66, %s67
    %p76 = scmp.eq.s32.totalorder %s14, 0
    %p77 = por %p75, %p76
    %p78 = scmp.ne.s32.totalorder %s66, %s67
    %p79 = scmp.eq.s32.totalorder %s15, 1
    %p80 = por %p78, %p79
    %p82 = scmp.ne.s32.totalorder %s67, %s81
    %p83 = scmp.eq.s32.totalorder %s15, 0
    %p84 = por %p82, %p83
    %s85 = ssub.s32 %s9, %s16
    %p86 = scmp.eq.s32.totalorder %s85, 0
    %s88 = sadd.s32 %s87, 1
    %s89 = scalar_select %p86, %s87, %s88
    %p92 = pneg %p86
    %p93 = scmp.eq.s32.totalorder %s9, 1
    %p94 = por %p92, %p93
    %p95 = scmp.ne.s32.totalorder %s87, %s90
    %p96 = scmp.eq.s32.totalorder %s9, 0
    %p97 = por %p95, %p96
    %p98 = scmp.ne.s32.totalorder %s87, %s90
    %p99 = scmp.eq.s32.totalorder %s14, 1
    %p100 = por %p98, %p99
    %p101 = scmp.ne.s32.totalorder %s90, %s91
    %p102 = scmp.eq.s32.totalorder %s14, 0
    %p103 = por %p101, %p102
    %p104 = scmp.ne.s32.totalorder %s90, %s91
    %p105 = scmp.eq.s32.totalorder %s15, 1
    %p106 = por %p104, %p105
    %p108 = scmp.ne.s32.totalorder %s91, %s107
    %p109 = scmp.eq.s32.totalorder %s15, 0
    %p110 = por %p108, %p109
    %p111 = scmp.le.s32.totalorder 1, %s9
    %p112 = scmp.lt.s32.totalorder %s9, 3
    %p113 = pnand %p111, %p112
    %p114 = pneg %p113
    // Predicated region
    $region9: #{se_layer.1} parent=5 // pred_check
      _
    $region10: #{se_layer.1} parent=5 // pred_check_branch
      %116 = sbr.rel (%p113) target = $region12
    $region11: #{se_layer.1} parent=5 // pred_region
      %s117 = ssub.s32 %s9, 1
      // Predicated region
      $region13: #{se_layer.1} parent=11 // pred_check
        %p118 = pneg %p56
      $region14: #{se_layer.1} parent=11 // pred_check_branch
        %120 = sbr.rel (%p118) target = $region16
      $region15: #{se_layer.1} parent=11 // pred_region
        _
      $region16: #{se_layer.1} parent=11 // pred_fallthru
        _
      // Predicated region
      $region17: #{se_layer.1} parent=11 // pred_check
        %p121 = pneg %p77
      $region18: #{se_layer.1} parent=11 // pred_check_branch
        %123 = sbr.rel (%p121) target = $region20
      $region19: #{se_layer.1} parent=11 // pred_region
        _
      $region20: #{se_layer.1} parent=11 // pred_fallthru
        _
    $region12: #{se_layer.1} parent=5 // pred_fallthru
      _
    %p124 = scmp.lt.s32.totalorder %s9, 2
    // Predicated region
    $region21: #{se_layer.1} parent=5 // pred_check
      %p125 = pneg %p124
    $region22: #{se_layer.1} parent=5 // pred_check_branch
      %127 = sbr.rel (%p125) target = $region24
    $region23: #{se_layer.1} parent=5 // pred_region
      // Predicated region
      $region25: #{se_layer.1} parent=23 // pred_check
        %p128 = pneg %p29
      $region26: #{se_layer.1} parent=23 // pred_check_branch
        %130 = sbr.rel (%p128) target = $region28
      $region27: #{se_layer.1} parent=23 // pred_region
        %p131 = scmp.lt.s32.totalorder %s9, 1
        %s132 = scalar_select %p131, %s9, 1
        %s133 = smul.addr %s132, 16
        %s134 = smul.addr %s133, 8
        %s135 = scalar_lea.vmem %s0, %s134
      $region28: #{se_layer.1} parent=23 // pred_fallthru
        _
    $region24: #{se_layer.1} parent=5 // pred_fallthru
      _
    %p136 = scmp.le.s32.totalorder 1, %s9
    %p137 = scmp.lt.s32.totalorder %s9, 3
    %p138 = pnand %p136, %p137
    %p139 = pneg %p138
    // Predicated region
    $region29: #{se_layer.1} parent=5 // pred_check
      _
    $region30: #{se_layer.1} parent=5 // pred_check_branch
      %141 = sbr.rel (%p138) target = $region32
    $region31: #{se_layer.1} parent=5 // pred_region
      %s142 = ssub.s32 %s9, 1
      %p143 = scmp.lt.s32.totalorder %s14, 1
      %s144 = scalar_select %p143, %s14, 1
      %s145 = smul.addr %s144, 16
      %s146 = smul.addr %s145, 8
      %s147 = scalar_lea.vmem %s0, %s146
      %p148 = pneg %p35
      %p149 = pneg %p32
      %p150 = pneg %p56
      %p151 = pneg %p53
      %p152 = pneg %p77
      %p153 = pneg %p74
      %p154 = pneg %p103
      %p155 = pneg %p100
      %p156 = scmp.lt.s32.totalorder %s14, 1
      %s157 = scalar_select %p156, %s14, 1
      %s158 = smul.addr %s157, 16
      %s159 = smul.addr %s158, 8
      %s160 = scalar_lea.vmem %s3, %s159
      %p161 = scmp.lt.s32.totalorder %s14, 1
      %s162 = scalar_select %p161, %s14, 1
      %s163 = smul.addr %s162, 16
      %s164 = smul.addr %s163, 8
      %s165 = scalar_lea.vmem %s0, %s164
      %p166 = scmp.lt.s32.totalorder %s14, 1
      %s167 = scalar_select %p166, %s14, 1
      %s168 = smul.addr %s167, 16
      %s169 = smul.addr %s168, 8
      %s170 = scalar_lea.vmem %s3, %s169
      %v171 = vld [vmem:[%s165] sm:$0xff]
      %v172 = vld [vmem:[%s165 + $0x8] sm:$0xff]
      %v173 = vld [vmem:[%s165 + $0x10] sm:$0xff]
      %v174 = vld [vmem:[%s165 + $0x18] sm:$0xff]
      %v175 = vld [vmem:[%s165 + $0x20] sm:$0xff]
      %v176 = vld [vmem:[%s165 + $0x28] sm:$0xff]
      %v177 = vld [vmem:[%s165 + $0x30] sm:$0xff]
      %v178 = vld [vmem:[%s165 + $0x38] sm:$0xff]
      %v179 = vld [vmem:[%s165 + $0x40] sm:$0xff]
      %v180 = vld [vmem:[%s165 + $0x48] sm:$0xff]
      %v181 = vld [vmem:[%s165 + $0x50] sm:$0xff]
      %v182 = vld [vmem:[%s165 + $0x58] sm:$0xff]
      %v183 = vld [vmem:[%s165 + $0x60] sm:$0xff]
      %v184 = vld [vmem:[%s165 + $0x68] sm:$0xff]
      %v185 = vld [vmem:[%s165 + $0x70] sm:$0xff]
      %v186 = vld [vmem:[%s165 + $0x78] sm:$0xff]
      %187 = vmatpush.msra.mxu0 1.0
      %188 = vmatpush.msra.mxu0 1.0
      %189 = vmatpush.msra.mxu0 1.0
      %190 = vmatpush.msra.mxu0 1.0
      %191 = vmatpush.msra.mxu0 1.0
      %192 = vmatpush.msra.mxu0 1.0
      %193 = vmatpush.msra.mxu0 1.0
      %194 = vmatpush.msra.mxu0 1.0
      %195 = vmatpush.msra.mxu0 1.0
      %196 = vmatpush.msra.mxu0 1.0
      %197 = vmatpush.msra.mxu0 1.0
      %198 = vmatpush.msra.mxu0 1.0
      %199 = vmatpush.msra.mxu0 1.0
      %200 = vmatpush.msra.mxu0 1.0
      %201 = vmatpush.msra.mxu0 1.0
      %202 = vmatpush.msra.mxu0 1.0
      %203 = vmatmul.f32.gmra.mxu0 %v171
      %v204 = vpop.f32.mrf.mxu0
      %v205 = vadd.f32 0.0, %v204
      %206 = vmatmul.f32.gmra.mxu0 %v173
      %v207 = vpop.f32.mrf.mxu0
      %v208 = vadd.f32 0.0, %v207
      %209 = vmatmul.f32.gmra.mxu0 %v175
      %v210 = vpop.f32.mrf.mxu0
      %v211 = vadd.f32 0.0, %v210
      %212 = vmatmul.f32.gmra.mxu0 %v177
      %v213 = vpop.f32.mrf.mxu0
      %v214 = vadd.f32 0.0, %v213
      %215 = vmatmul.f32.gmra.mxu0 %v179
      %v216 = vpop.f32.mrf.mxu0
      %v217 = vadd.f32 0.0, %v216
      %218 = vmatmul.f32.gmra.mxu0 %v181
      %v219 = vpop.f32.mrf.mxu0
      %v220 = vadd.f32 0.0, %v219
      %221 = vmatmul.f32.gmra.mxu0 %v183
      %v222 = vpop.f32.mrf.mxu0
      %v223 = vadd.f32 0.0, %v222
      %224 = vmatmul.f32.gmra.mxu0 %v185
      %v225 = vpop.f32.mrf.mxu0
      %v226 = vadd.f32 0.0, %v225
      %227 = vdwg.mxu0
      %228 = vmatpush.msra.mxu0 1.0
      %229 = vmatpush.msra.mxu0 1.0
      %230 = vmatpush.msra.mxu0 1.0
      %231 = vmatpush.msra.mxu0 1.0
      %232 = vmatpush.msra.mxu0 1.0
      %233 = vmatpush.msra.mxu0 1.0
      %234 = vmatpush.msra.mxu0 1.0
      %235 = vmatpush.msra.mxu0 1.0
      %236 = vmatpush.msra.mxu0 1.0
      %237 = vmatpush.msra.mxu0 1.0
      %238 = vmatpush.msra.mxu0 1.0
      %239 = vmatpush.msra.mxu0 1.0
      %240 = vmatpush.msra.mxu0 1.0
      %241 = vmatpush.msra.mxu0 1.0
      %242 = vmatpush.msra.mxu0 1.0
      %243 = vmatpush.msra.mxu0 1.0
      %244 = vmatmul.f32.gmra.mxu0 %v172
      %v245 = vpop.f32.mrf.mxu0
      %v246 = vadd.f32 %v205, %v245
      %247 = vmatmul.f32.gmra.mxu0 %v174
      %v248 = vpop.f32.mrf.mxu0
      %v249 = vadd.f32 %v208, %v248
      %250 = vmatmul.f32.gmra.mxu0 %v176
      %v251 = vpop.f32.mrf.mxu0
      %v252 = vadd.f32 %v211, %v251
      %253 = vmatmul.f32.gmra.mxu0 %v178
      %v254 = vpop.f32.mrf.mxu0
      %v255 = vadd.f32 %v214, %v254
      %256 = vmatmul.f32.gmra.mxu0 %v180
      %v257 = vpop.f32.mrf.mxu0
      %v258 = vadd.f32 %v217, %v257
      %259 = vmatmul.f32.gmra.mxu0 %v182
      %v260 = vpop.f32.mrf.mxu0
      %v261 = vadd.f32 %v220, %v260
      %262 = vmatmul.f32.gmra.mxu0 %v184
      %v263 = vpop.f32.mrf.mxu0
      %v264 = vadd.f32 %v223, %v263
      %265 = vmatmul.f32.gmra.mxu0 %v186
      %v266 = vpop.f32.mrf.mxu0
      %v267 = vadd.f32 %v226, %v266
      %268 = vdwg.mxu0
      %v269 = vmul.f32 %v246, 0.00390625
      %v270 = vmul.f32 %v249, 0.00390625
      %v271 = vmul.f32 %v252, 0.00390625
      %v272 = vmul.f32 %v255, 0.00390625
      %v273 = vmul.f32 %v258, 0.00390625
      %v274 = vmul.f32 %v261, 0.00390625
      %v275 = vmul.f32 %v264, 0.00390625
      %v276 = vmul.f32 %v267, 0.00390625
      %v277 = vld [vmem:[%s1] sm:$0xff]
      %vm278 = vcmask 523264
      %v280 = vsel %vm278, %v277, 0
      %282 = vmatpush.msra.mxu0 0.0
      %283 = vmatpush.msra.mxu0 0.0
      %284 = vmatpush.msra.mxu0 0.0
      %285 = vmatpush.msra.mxu0 0.0
      %286 = vmatpush.msra.mxu0 0.0
      %287 = vmatpush.msra.mxu0 0.0
      %288 = vmatpush.msra.mxu0 0.0
      %289 = vmatpush.msra.mxu0 0.0
      %290 = vmatpush.msra.mxu0 %v276
      %291 = vmatpush.msra.mxu0 %v275
      %292 = vmatpush.msra.mxu0 %v274
      %293 = vmatpush.msra.mxu0 %v273
      %294 = vmatpush.msra.mxu0 %v272
      %295 = vmatpush.msra.mxu0 %v271
      %296 = vmatpush.msra.mxu0 %v270
      %297 = vmatpush.msra.mxu0 %v269
      %298 = vmatmul.f32.gmra.mxu0 %v280
      %v299 = vpop.f32.mrf.mxu0
      %v300 = vadd.f32 0.0, %v299
      %301 = vdwg.mxu0
      %v302 = vmax.f32 %v300, 0.0
      %v303 = vld [vmem:[%s2] sm:$0xff]
      %v304 = vld [vmem:[%s2 + $0x8] sm:$0xff]
      %v305 = vld [vmem:[%s2 + $0x10] sm:$0xff]
      %v306 = vld [vmem:[%s2 + $0x18] sm:$0xff]
      %v307 = vld [vmem:[%s2 + $0x20] sm:$0xff]
      %v308 = vld [vmem:[%s2 + $0x28] sm:$0xff]
      %v309 = vld [vmem:[%s2 + $0x30] sm:$0xff]
      %v310 = vld [vmem:[%s2 + $0x38] sm:$0xff]
      %vm311 = vcmask 64512
      %v313 = vsel %vm311, %v303, 0
      %v316 = vsel %vm311, %v304, 0
      %v319 = vsel %vm311, %v305, 0
      %v322 = vsel %vm311, %v306, 0
      %v325 = vsel %vm311, %v307, 0
      %v328 = vsel %vm311, %v308, 0
      %v331 = vsel %vm311, %v309, 0
      %v334 = vsel %vm311, %v310, 0
      %336 = vmatpush.msra.mxu0 0.0
      %337 = vmatpush.msra.mxu0 0.0
      %338 = vmatpush.msra.mxu0 0.0
      %339 = vmatpush.msra.mxu0 0.0
      %340 = vmatpush.msra.mxu0 0.0
      %341 = vmatpush.msra.mxu0 0.0
      %342 = vmatpush.msra.mxu0 0.0
      %343 = vmatpush.msra.mxu0 0.0
      %344 = vmatpush.msra.mxu0 0.0
      %345 = vmatpush.msra.mxu0 0.0
      %346 = vmatpush.msra.mxu0 0.0
      %347 = vmatpush.msra.mxu0 0.0
      %348 = vmatpush.msra.mxu0 0.0
      %349 = vmatpush.msra.mxu0 0.0
      %350 = vmatpush.msra.mxu0 0.0
      %351 = vmatpush.msra.mxu0 %v302
      %352 = vmatmul.f32.gmra.mxu0 %v313
      %v353 = vpop.f32.mrf.mxu0
      %v354 = vadd.f32 0.0, %v353
      %355 = vmatmul.f32.gmra.mxu0 %v316
      %v356 = vpop.f32.mrf.mxu0
      %v357 = vadd.f32 0.0, %v356
      %358 = vmatmul.f32.gmra.mxu0 %v319
      %v359 = vpop.f32.mrf.mxu0
      %v360 = vadd.f32 0.0, %v359
      %361 = vmatmul.f32.gmra.mxu0 %v322
      %v362 = vpop.f32.mrf.mxu0
      %v363 = vadd.f32 0.0, %v362
      %364 = vmatmul.f32.gmra.mxu0 %v325
      %v365 = vpop.f32.mrf.mxu0
      %v366 = vadd.f32 0.0, %v365
      %367 = vmatmul.f32.gmra.mxu0 %v328
      %v368 = vpop.f32.mrf.mxu0
      %v369 = vadd.f32 0.0, %v368
      %370 = vmatmul.f32.gmra.mxu0 %v331
      %v371 = vpop.f32.mrf.mxu0
      %v372 = vadd.f32 0.0, %v371
      %373 = vmatmul.f32.gmra.mxu0 %v334
      %v374 = vpop.f32.mrf.mxu0
      %v375 = vadd.f32 0.0, %v374
      %376 = vdwg.mxu0
      %v377 = vxor.u32 %v354, 2147483648
      %v378 = vxor.u32 %v357, 2147483648
      %v379 = vxor.u32 %v360, 2147483648
      %v380 = vxor.u32 %v363, 2147483648
      %v381 = vxor.u32 %v366, 2147483648
      %v382 = vxor.u32 %v369, 2147483648
      %v383 = vxor.u32 %v372, 2147483648
      %v384 = vxor.u32 %v375, 2147483648
      %v385 = vmul.f32 %v377, 1.442695
      %v386 = vpow.pop %v385
      %v387 = vmul.f32 %v378, 1.442695
      %v388 = vpow.pop %v387
      %v389 = vmul.f32 %v379, 1.442695
      %v390 = vpow.pop %v389
      %v391 = vmul.f32 %v380, 1.442695
      %v392 = vpow.pop %v391
      %v393 = vmul.f32 %v381, 1.442695
      %v394 = vpow.pop %v393
      %v395 = vmul.f32 %v382, 1.442695
      %v396 = vpow.pop %v395
      %v397 = vmul.f32 %v383, 1.442695
      %v398 = vpow.pop %v397
      %v399 = vmul.f32 %v384, 1.442695
      %v400 = vpow.pop %v399
      %v401 = vadd.f32 %v386, 1.0
      %v402 = vadd.f32 %v388, 1.0
      %v403 = vadd.f32 %v390, 1.0
      %v404 = vadd.f32 %v392, 1.0
      %v405 = vadd.f32 %v394, 1.0
      %v406 = vadd.f32 %v396, 1.0
      %v407 = vadd.f32 %v398, 1.0
      %v408 = vadd.f32 %v400, 1.0
      %v409 = vrcp.pop %v401
      %v410 = vmul.f32 %v401, %v409
      %v411 = vsub.f32 1.0, %v410
      %v412 = vmul.f32 %v409, %v411
      %v413 = vadd.f32 %v409, %v412
      %vm414 = vweird.f32 %v401
      %vm415 = vweird.f32 %v409
      %vm416 = vmor %vm414, %vm415
      %v417 = vsel %vm416, %v409, %v413
      %v418 = vand.u32 2147483647, %v401
      %vm419 = vcmp.eq.f32.partialorder %v418, 8.507059e+37
      %v420 = vand.u32 %v401, 2147483648
      %v421 = vor.u32 1.1754944e-38, %v420
      %v422 = vsel %vm419, %v421, %v417
      %v423 = vmul.f32 1.0, %v422
      %v424 = vrcp.pop %v402
      %v425 = vmul.f32 %v402, %v424
      %v426 = vsub.f32 1.0, %v425
      %v427 = vmul.f32 %v424, %v426
      %v428 = vadd.f32 %v424, %v427
      %vm429 = vweird.f32 %v402
      %vm430 = vweird.f32 %v424
      %vm431 = vmor %vm429, %vm430
      %v432 = vsel %vm431, %v424, %v428
      %v433 = vand.u32 2147483647, %v402
      %vm434 = vcmp.eq.f32.partialorder %v433, 8.507059e+37
      %v435 = vand.u32 %v402, 2147483648
      %v436 = vor.u32 1.1754944e-38, %v435
      %v437 = vsel %vm434, %v436, %v432
      %v438 = vmul.f32 1.0, %v437
      %v439 = vrcp.pop %v403
      %v440 = vmul.f32 %v403, %v439
      %v441 = vsub.f32 1.0, %v440
      %v442 = vmul.f32 %v439, %v441
      %v443 = vadd.f32 %v439, %v442
      %vm444 = vweird.f32 %v403
      %vm445 = vweird.f32 %v439
      %vm446 = vmor %vm444, %vm445
      %v447 = vsel %vm446, %v439, %v443
      %v448 = vand.u32 2147483647, %v403
      %vm449 = vcmp.eq.f32.partialorder %v448, 8.507059e+37
      %v450 = vand.u32 %v403, 2147483648
      %v451 = vor.u32 1.1754944e-38, %v450
      %v452 = vsel %vm449, %v451, %v447
      %v453 = vmul.f32 1.0, %v452
      %v454 = vrcp.pop %v404
      %v455 = vmul.f32 %v404, %v454
      %v456 = vsub.f32 1.0, %v455
      %v457 = vmul.f32 %v454, %v456
      %v458 = vadd.f32 %v454, %v457
      %vm459 = vweird.f32 %v404
      %vm460 = vweird.f32 %v454
      %vm461 = vmor %vm459, %vm460
      %v462 = vsel %vm461, %v454, %v458
      %v463 = vand.u32 2147483647, %v404
      %vm464 = vcmp.eq.f32.partialorder %v463, 8.507059e+37
      %v465 = vand.u32 %v404, 2147483648
      %v466 = vor.u32 1.1754944e-38, %v465
      %v467 = vsel %vm464, %v466, %v462
      %v468 = vmul.f32 1.0, %v467
      %v469 = vrcp.pop %v405
      %v470 = vmul.f32 %v405, %v469
      %v471 = vsub.f32 1.0, %v470
      %v472 = vmul.f32 %v469, %v471
      %v473 = vadd.f32 %v469, %v472
      %vm474 = vweird.f32 %v405
      %vm475 = vweird.f32 %v469
      %vm476 = vmor %vm474, %vm475
      %v477 = vsel %vm476, %v469, %v473
      %v478 = vand.u32 2147483647, %v405
      %vm479 = vcmp.eq.f32.partialorder %v478, 8.507059e+37
      %v480 = vand.u32 %v405, 2147483648
      %v481 = vor.u32 1.1754944e-38, %v480
      %v482 = vsel %vm479, %v481, %v477
      %v483 = vmul.f32 1.0, %v482
      %v484 = vrcp.pop %v406
      %v485 = vmul.f32 %v406, %v484
      %v486 = vsub.f32 1.0, %v485
      %v487 = vmul.f32 %v484, %v486
      %v488 = vadd.f32 %v484, %v487
      %vm489 = vweird.f32 %v406
      %vm490 = vweird.f32 %v484
      %vm491 = vmor %vm489, %vm490
      %v492 = vsel %vm491, %v484, %v488
      %v493 = vand.u32 2147483647, %v406
      %vm494 = vcmp.eq.f32.partialorder %v493, 8.507059e+37
      %v495 = vand.u32 %v406, 2147483648
      %v496 = vor.u32 1.1754944e-38, %v495
      %v497 = vsel %vm494, %v496, %v492
      %v498 = vmul.f32 1.0, %v497
      %v499 = vrcp.pop %v407
      %v500 = vmul.f32 %v407, %v499
      %v501 = vsub.f32 1.0, %v500
      %v502 = vmul.f32 %v499, %v501
      %v503 = vadd.f32 %v499, %v502
      %vm504 = vweird.f32 %v407
      %vm505 = vweird.f32 %v499
      %vm506 = vmor %vm504, %vm505
      %v507 = vsel %vm506, %v499, %v503
      %v508 = vand.u32 2147483647, %v407
      %vm509 = vcmp.eq.f32.partialorder %v508, 8.507059e+37
      %v510 = vand.u32 %v407, 2147483648
      %v511 = vor.u32 1.1754944e-38, %v510
      %v512 = vsel %vm509, %v511, %v507
      %v513 = vmul.f32 1.0, %v512
      %v514 = vrcp.pop %v408
      %v515 = vmul.f32 %v408, %v514
      %v516 = vsub.f32 1.0, %v515
      %v517 = vmul.f32 %v514, %v516
      %v518 = vadd.f32 %v514, %v517
      %vm519 = vweird.f32 %v408
      %vm520 = vweird.f32 %v514
      %vm521 = vmor %vm519, %vm520
      %v522 = vsel %vm521, %v514, %v518
      %v523 = vand.u32 2147483647, %v408
      %vm524 = vcmp.eq.f32.partialorder %v523, 8.507059e+37
      %v525 = vand.u32 %v408, 2147483648
      %v526 = vor.u32 1.1754944e-38, %v525
      %v527 = vsel %vm524, %v526, %v522
      %v528 = vmul.f32 1.0, %v527
      %530 = vset.pattern.permute.xlu0 0
      %531 = vperm.xlu0 %530, %v423
      %v532 = vpop.permute.xlu0 %531
      %535 = vset.pattern.permute.xlu0 0
      %536 = vperm.xlu0 %535, %v438
      %v537 = vpop.permute.xlu0 %536
      %540 = vset.pattern.permute.xlu0 0
      %541 = vperm.xlu0 %540, %v453
      %v542 = vpop.permute.xlu0 %541
      %545 = vset.pattern.permute.xlu0 0
      %546 = vperm.xlu0 %545, %v468
      %v547 = vpop.permute.xlu0 %546
      %550 = vset.pattern.permute.xlu0 0
      %551 = vperm.xlu0 %550, %v483
      %v552 = vpop.permute.xlu0 %551
      %555 = vset.pattern.permute.xlu0 0
      %556 = vperm.xlu0 %555, %v498
      %v557 = vpop.permute.xlu0 %556
      %560 = vset.pattern.permute.xlu0 0
      %561 = vperm.xlu0 %560, %v513
      %v562 = vpop.permute.xlu0 %561
      %565 = vset.pattern.permute.xlu0 0
      %566 = vperm.xlu0 %565, %v528
      %v567 = vpop.permute.xlu0 %566
      %v569 = vmul.f32 %v171, %v532
      %v570 = vmul.f32 %v172, %v532
      %v571 = vmul.f32 %v173, %v537
      %v572 = vmul.f32 %v174, %v537
      %v573 = vmul.f32 %v175, %v542
      %v574 = vmul.f32 %v176, %v542
      %v575 = vmul.f32 %v177, %v547
      %v576 = vmul.f32 %v178, %v547
      %v577 = vmul.f32 %v179, %v552
      %v578 = vmul.f32 %v180, %v552
      %v579 = vmul.f32 %v181, %v557
      %v580 = vmul.f32 %v182, %v557
      %v581 = vmul.f32 %v183, %v562
      %v582 = vmul.f32 %v184, %v562
      %v583 = vmul.f32 %v185, %v567
      %v584 = vmul.f32 %v186, %v567
      %585 = vst [vmem:[%s170] sm:$0xff] %v569
      %586 = vst [vmem:[%s170 + $0x8] sm:$0xff] %v570
      %587 = vst [vmem:[%s170 + $0x10] sm:$0xff] %v571
      %588 = vst [vmem:[%s170 + $0x18] sm:$0xff] %v572
      %589 = vst [vmem:[%s170 + $0x20] sm:$0xff] %v573
      %590 = vst [vmem:[%s170 + $0x28] sm:$0xff] %v574
      %591 = vst [vmem:[%s170 + $0x30] sm:$0xff] %v575
      %592 = vst [vmem:[%s170 + $0x38] sm:$0xff] %v576
      %593 = vst [vmem:[%s170 + $0x40] sm:$0xff] %v577
      %594 = vst [vmem:[%s170 + $0x48] sm:$0xff] %v578
      %595 = vst [vmem:[%s170 + $0x50] sm:$0xff] %v579
      %596 = vst [vmem:[%s170 + $0x58] sm:$0xff] %v580
      %597 = vst [vmem:[%s170 + $0x60] sm:$0xff] %v581
      %598 = vst [vmem:[%s170 + $0x68] sm:$0xff] %v582
      %599 = vst [vmem:[%s170 + $0x70] sm:$0xff] %v583
      %600 = vst [vmem:[%s170 + $0x78] sm:$0xff] %v584
      %p601 = scmp.lt.s32.totalorder %s14, 1
      %s602 = scalar_select %p601, %s14, 1
      %s603 = smul.addr %s602, 16
      %s604 = smul.addr %s603, 8
      %s605 = scalar_lea.vmem %s3, %s604
      // Predicated region
      $region33: #{se_layer.1} parent=31 // pred_check
        %p606 = pneg %p100
      $region34: #{se_layer.1} parent=31 // pred_check_branch
        %608 = sbr.rel (%p606) target = $region36
      $region35: #{se_layer.1} parent=31 // pred_region
        _
      $region36: #{se_layer.1} parent=31 // pred_fallthru
        _
    $region32: #{se_layer.1} parent=5 // pred_fallthru
      _
    %p609 = scmp.le.s32.totalorder 2, %s9
    // Predicated region
    $region37: #{se_layer.1} parent=5 // pred_check
      %p610 = pneg %p609
    $region38: #{se_layer.1} parent=5 // pred_check_branch
      %612 = sbr.rel (%p610) target = $region40
    $region39: #{se_layer.1} parent=5 // pred_region
      %s613 = ssub.s32 %s9, 2
      // Predicated region
      $region41: #{se_layer.1} parent=39 // pred_check
        %p614 = pneg %p106
      $region42: #{se_layer.1} parent=39 // pred_check_branch
        %616 = sbr.rel (%p614) target = $region44
      $region43: #{se_layer.1} parent=39 // pred_region
        %p617 = scmp.lt.s32.totalorder %s15, 1
        %s618 = scalar_select %p617, %s15, 1
        %s619 = smul.addr %s618, 16
        %s620 = smul.addr %s619, 8
        %s621 = scalar_lea.vmem %s3, %s620
      $region44: #{se_layer.1} parent=39 // pred_fallthru
        _
    $region40: #{se_layer.1} parent=5 // pred_fallthru
      _
  $region6: #{se_layer.1} parent=0 // loop_footer
    %s13 = sadd.s32 1, %s9
  $region7: #{se_layer.1} parent=0 // loop_footer_branch
    %8 = sbr.rel target = $region3
  $region8: #{se_layer.1} parent=0 // loop_exit
    _

</llo_original>
